<compile_context>
chip_gen: v7x
topology: tpu7x:2x2x1
jax: 0.10.0
libtpu: 0.0.40
codegen_flags: <defaults>
</compile_context>

<pallas_src>
import jax
import jax.numpy as jnp
from jax.experimental import pallas as pl
from jax.experimental.pallas import tpu as pltpu


def _add_kernel(a_ref, b_ref, o_ref):
    # Whole array resident in VMEM; pure VPU elementwise add.
    o_ref[...] = a_ref[...] + b_ref[...]


def pallas_add(a: jax.Array, b: jax.Array) -> jax.Array:
    """out = a + b, single-block gridless Pallas kernel in natural layout."""
    assert a.shape == b.shape and a.dtype == b.dtype
    return pl.pallas_call(
        _add_kernel,
        out_shape=jax.ShapeDtypeStruct(a.shape, a.dtype),
        in_specs=[
            pl.BlockSpec(memory_space=pltpu.MemorySpace.VMEM),
            pl.BlockSpec(memory_space=pltpu.MemorySpace.VMEM),
        ],
        out_specs=pl.BlockSpec(memory_space=pltpu.MemorySpace.VMEM),
        # Alias the caller's original buffer (no wrapper copies in between),
        # so the add runs in-place when x119 is donated.
        input_output_aliases={0: 0},
    )(a, b)


if __name__ == "__main__":
    key = jax.random.PRNGKey(0)
    k1, k2 = jax.random.split(key)
    # Shapes implied by the module's forward: [1, 192, 7, 7]
    x119 = jax.random.normal(k1, (1, 192, 7, 7), dtype=jnp.float32)
    x111 = jax.random.normal(k2, (1, 192, 7, 7), dtype=jnp.float32)

    out = pallas_add(x119, x111)
    jax.block_until_ready(out)

    # Correctness check against plain JAX reference.
    ref = x119 + x111
    assert out.shape == ref.shape
    assert jnp.allclose(out, ref, atol=1e-6), "mismatch vs reference add"

    print("KERNEL_OK")
</pallas_src>

<mosaic_0001>
module attributes {stable_mosaic.version = 11 : i64} {
  func.func @_add_kernel(%arg0: memref<1x192x7x7xf32, #tpu.memory_space<vmem>>, %arg1: memref<1x192x7x7xf32, #tpu.memory_space<vmem>>, %arg2: memref<1x192x7x7xf32, #tpu.memory_space<vmem>>) attributes {dimension_semantics = [], scalar_prefetch = 0 : i64, scratch_operands = 0 : i64, tpu.core_type = #tpu.core_type<tc>} {
    %c0 = arith.constant 0 : index
    %c0_0 = arith.constant 0 : index
    %c0_1 = arith.constant 0 : index
    %c0_2 = arith.constant 0 : index
    %0 = vector.load %arg0[%c0, %c0_0, %c0_1, %c0_2] : memref<1x192x7x7xf32, #tpu.memory_space<vmem>>, vector<1x192x7x7xf32>
    %c0_3 = arith.constant 0 : index
    %c0_4 = arith.constant 0 : index
    %c0_5 = arith.constant 0 : index
    %c0_6 = arith.constant 0 : index
    %1 = vector.load %arg1[%c0_3, %c0_4, %c0_5, %c0_6] : memref<1x192x7x7xf32, #tpu.memory_space<vmem>>, vector<1x192x7x7xf32>
    %2 = arith.addf %0, %1 : vector<1x192x7x7xf32>
    %c0_7 = arith.constant 0 : index
    %c0_8 = arith.constant 0 : index
    %c0_9 = arith.constant 0 : index
    %c0_10 = arith.constant 0 : index
    %3 = vector.load %arg2[%c0_7, %c0_8, %c0_9, %c0_10] : memref<1x192x7x7xf32, #tpu.memory_space<vmem>>, vector<1x192x7x7xf32>
    tpu.vector_store %arg2[%c0_7, %c0_8, %c0_9, %c0_10], %2 {strides = array<i32>} : memref<1x192x7x7xf32, #tpu.memory_space<vmem>>, vector<1x192x7x7xf32>,
    return
  }
}

</mosaic_0001>

<llo_original>
// kernel: tpu_custom_call.1
$region0: #{tpu_custom_call.1}
  #allocation0 [shape = 'u32[]', space=smem, size = 0x4, offset = 0x4, fixed_abs, tag = 'smem constant byte address 0x4 - core index']
  #allocation1 [shape = 'u32[144,128]{1,0:T(1,128)}', space=vmem, size = 0x12000, scoped, tag = 'internal scratch']
  %s0 = inlined_call_operand.vmem [shape: f32[1,192,7,7], index: 0, kind: input, shape index: {}, may-alias: {0,2}]
  %s1 = inlined_call_operand.vmem [shape: f32[1,192,7,7], index: 1, kind: input, shape index: {}]
  %s2 = inlined_call_operand.vmem [shape: f32[1,192,7,7], index: 2, kind: output, shape index: {}, may-alias: {0,2}]
  %s3 = sld [smem:[#allocation0]]
  $region18: #{tpu_custom_call.1} parent=0
    _
  %s5 = ssub.s32 1, %s3
  %s6 = scalar_select 0, %s5, %s3
  // Predicated region
  $region2: #{tpu_custom_call.1} parent=0 // pred_check
    _
  $region3: #{tpu_custom_call.1} parent=0 // pred_check_branch
    %8 = sbr.rel (0) target = $region5
  $region4: #{tpu_custom_call.1} parent=0 // pred_region
    _
  $region5: #{tpu_custom_call.1} parent=0 // pred_fallthru
    _
  // Predicated region
  $region6: #{tpu_custom_call.1} parent=0 // pred_check
    _
  $region7: #{tpu_custom_call.1} parent=0 // pred_check_branch
    %10 = sbr.rel (0) target = $region9
  $region8: #{tpu_custom_call.1} parent=0 // pred_region
    _
  $region9: #{tpu_custom_call.1} parent=0 // pred_fallthru
    _
  %v11 = vld [vmem:[%s0] sm:$0x7f]
  %v12 = vld [vmem:[%s0 + $0x8] sm:$0x7f]
  %v13 = vld [vmem:[%s0 + $0x10] sm:$0x7f]
  %v14 = vld [vmem:[%s0 + $0x18] sm:$0x7f]
  %v15 = vld [vmem:[%s0 + $0x20] sm:$0x7f]
  %v16 = vld [vmem:[%s0 + $0x28] sm:$0x7f]
  %v17 = vld [vmem:[%s0 + $0x30] sm:$0x7f]
  %v18 = vld [vmem:[%s0 + $0x38] sm:$0x7f]
  %v19 = vld [vmem:[%s0 + $0x40] sm:$0x7f]
  %v20 = vld [vmem:[%s0 + $0x48] sm:$0x7f]
  %v21 = vld [vmem:[%s0 + $0x50] sm:$0x7f]
  %v22 = vld [vmem:[%s0 + $0x58] sm:$0x7f]
  %v23 = vld [vmem:[%s0 + $0x60] sm:$0x7f]
  %v24 = vld [vmem:[%s0 + $0x68] sm:$0x7f]
  %v25 = vld [vmem:[%s0 + $0x70] sm:$0x7f]
  %v26 = vld [vmem:[%s0 + $0x78] sm:$0x7f]
  %v27 = vld [vmem:[%s0 + $0x80] sm:$0x7f]
  %v28 = vld [vmem:[%s0 + $0x88] sm:$0x7f]
  %v29 = vld [vmem:[%s0 + $0x90] sm:$0x7f]
  %v30 = vld [vmem:[%s0 + $0x98] sm:$0x7f]
  %v31 = vld [vmem:[%s0 + $0xa0] sm:$0x7f]
  %v32 = vld [vmem:[%s0 + $0xa8] sm:$0x7f]
  %v33 = vld [vmem:[%s0 + $0xb0] sm:$0x7f]
  %v34 = vld [vmem:[%s0 + $0xb8] sm:$0x7f]
  %v35 = vld [vmem:[%s0 + $0xc0] sm:$0x7f]
  %v36 = vld [vmem:[%s0 + $0xc8] sm:$0x7f]
  %v37 = vld [vmem:[%s0 + $0xd0] sm:$0x7f]
  %v38 = vld [vmem:[%s0 + $0xd8] sm:$0x7f]
  %v39 = vld [vmem:[%s0 + $0xe0] sm:$0x7f]
  %v40 = vld [vmem:[%s0 + $0xe8] sm:$0x7f]
  %v41 = vld [vmem:[%s0 + $0xf0] sm:$0x7f]
  %v42 = vld [vmem:[%s0 + $0xf8] sm:$0x7f]
  %v43 = vld [vmem:[%s0 + $0x100] sm:$0x7f]
  %v44 = vld [vmem:[%s0 + $0x108] sm:$0x7f]
  %v45 = vld [vmem:[%s0 + $0x110] sm:$0x7f]
  %v46 = vld [vmem:[%s0 + $0x118] sm:$0x7f]
  %v47 = vld [vmem:[%s0 + $0x120] sm:$0x7f]
  %v48 = vld [vmem:[%s0 + $0x128] sm:$0x7f]
  %v49 = vld [vmem:[%s0 + $0x130] sm:$0x7f]
  %v50 = vld [vmem:[%s0 + $0x138] sm:$0x7f]
  %v51 = vld [vmem:[%s0 + $0x140] sm:$0x7f]
  %v52 = vld [vmem:[%s0 + $0x148] sm:$0x7f]
  %v53 = vld [vmem:[%s0 + $0x150] sm:$0x7f]
  %v54 = vld [vmem:[%s0 + $0x158] sm:$0x7f]
  %v55 = vld [vmem:[%s0 + $0x160] sm:$0x7f]
  %v56 = vld [vmem:[%s0 + $0x168] sm:$0x7f]
  %v57 = vld [vmem:[%s0 + $0x170] sm:$0x7f]
  %v58 = vld [vmem:[%s0 + $0x178] sm:$0x7f]
  %v59 = vld [vmem:[%s0 + $0x180] sm:$0x7f]
  %v60 = vld [vmem:[%s0 + $0x188] sm:$0x7f]
  %v61 = vld [vmem:[%s0 + $0x190] sm:$0x7f]
  %v62 = vld [vmem:[%s0 + $0x198] sm:$0x7f]
  %v63 = vld [vmem:[%s0 + $0x1a0] sm:$0x7f]
  %v64 = vld [vmem:[%s0 + $0x1a8] sm:$0x7f]
  %v65 = vld [vmem:[%s0 + $0x1b0] sm:$0x7f]
  %v66 = vld [vmem:[%s0 + $0x1b8] sm:$0x7f]
  %v67 = vld [vmem:[%s0 + $0x1c0] sm:$0x7f]
  %v68 = vld [vmem:[%s0 + $0x1c8] sm:$0x7f]
  %v69 = vld [vmem:[%s0 + $0x1d0] sm:$0x7f]
  %v70 = vld [vmem:[%s0 + $0x1d8] sm:$0x7f]
  %v71 = vld [vmem:[%s0 + $0x1e0] sm:$0x7f]
  %v72 = vld [vmem:[%s0 + $0x1e8] sm:$0x7f]
  %v73 = vld [vmem:[%s0 + $0x1f0] sm:$0x7f]
  %v74 = vld [vmem:[%s0 + $0x1f8] sm:$0x7f]
  %v75 = vld [vmem:[%s0 + $0x200] sm:$0x7f]
  %v76 = vld [vmem:[%s0 + $0x208] sm:$0x7f]
  %v77 = vld [vmem:[%s0 + $0x210] sm:$0x7f]
  %v78 = vld [vmem:[%s0 + $0x218] sm:$0x7f]
  %v79 = vld [vmem:[%s0 + $0x220] sm:$0x7f]
  %v80 = vld [vmem:[%s0 + $0x228] sm:$0x7f]
  %v81 = vld [vmem:[%s0 + $0x230] sm:$0x7f]
  %v82 = vld [vmem:[%s0 + $0x238] sm:$0x7f]
  %v83 = vld [vmem:[%s0 + $0x240] sm:$0x7f]
  %v84 = vld [vmem:[%s0 + $0x248] sm:$0x7f]
  %v85 = vld [vmem:[%s0 + $0x250] sm:$0x7f]
  %v86 = vld [vmem:[%s0 + $0x258] sm:$0x7f]
  %v87 = vld [vmem:[%s0 + $0x260] sm:$0x7f]
  %v88 = vld [vmem:[%s0 + $0x268] sm:$0x7f]
  %v89 = vld [vmem:[%s0 + $0x270] sm:$0x7f]
  %v90 = vld [vmem:[%s0 + $0x278] sm:$0x7f]
  %v91 = vld [vmem:[%s0 + $0x280] sm:$0x7f]
  %v92 = vld [vmem:[%s0 + $0x288] sm:$0x7f]
  %v93 = vld [vmem:[%s0 + $0x290] sm:$0x7f]
  %v94 = vld [vmem:[%s0 + $0x298] sm:$0x7f]
  %v95 = vld [vmem:[%s0 + $0x2a0] sm:$0x7f]
  %v96 = vld [vmem:[%s0 + $0x2a8] sm:$0x7f]
  %v97 = vld [vmem:[%s0 + $0x2b0] sm:$0x7f]
  %v98 = vld [vmem:[%s0 + $0x2b8] sm:$0x7f]
  %v99 = vld [vmem:[%s0 + $0x2c0] sm:$0x7f]
  %v100 = vld [vmem:[%s0 + $0x2c8] sm:$0x7f]
  %v101 = vld [vmem:[%s0 + $0x2d0] sm:$0x7f]
  %v102 = vld [vmem:[%s0 + $0x2d8] sm:$0x7f]
  %v103 = vld [vmem:[%s0 + $0x2e0] sm:$0x7f]
  %v104 = vld [vmem:[%s0 + $0x2e8] sm:$0x7f]
  %v105 = vld [vmem:[%s0 + $0x2f0] sm:$0x7f]
  %v106 = vld [vmem:[%s0 + $0x2f8] sm:$0x7f]
  %v107 = vld [vmem:[%s0 + $0x300] sm:$0x7f]
  %v108 = vld [vmem:[%s0 + $0x308] sm:$0x7f]
  %v109 = vld [vmem:[%s0 + $0x310] sm:$0x7f]
  %v110 = vld [vmem:[%s0 + $0x318] sm:$0x7f]
  %v111 = vld [vmem:[%s0 + $0x320] sm:$0x7f]
  %v112 = vld [vmem:[%s0 + $0x328] sm:$0x7f]
  %v113 = vld [vmem:[%s0 + $0x330] sm:$0x7f]
  %v114 = vld [vmem:[%s0 + $0x338] sm:$0x7f]
  %v115 = vld [vmem:[%s0 + $0x340] sm:$0x7f]
  %v116 = vld [vmem:[%s0 + $0x348] sm:$0x7f]
  %v117 = vld [vmem:[%s0 + $0x350] sm:$0x7f]
  %v118 = vld [vmem:[%s0 + $0x358] sm:$0x7f]
  %v119 = vld [vmem:[%s0 + $0x360] sm:$0x7f]
  %v120 = vld [vmem:[%s0 + $0x368] sm:$0x7f]
  %v121 = vld [vmem:[%s0 + $0x370] sm:$0x7f]
  %v122 = vld [vmem:[%s0 + $0x378] sm:$0x7f]
  %v123 = vld [vmem:[%s0 + $0x380] sm:$0x7f]
  %v124 = vld [vmem:[%s0 + $0x388] sm:$0x7f]
  %v125 = vld [vmem:[%s0 + $0x390] sm:$0x7f]
  %v126 = vld [vmem:[%s0 + $0x398] sm:$0x7f]
  %v127 = vld [vmem:[%s0 + $0x3a0] sm:$0x7f]
  %v128 = vld [vmem:[%s0 + $0x3a8] sm:$0x7f]
  %v129 = vld [vmem:[%s0 + $0x3b0] sm:$0x7f]
  %v130 = vld [vmem:[%s0 + $0x3b8] sm:$0x7f]
  %v131 = vld [vmem:[%s0 + $0x3c0] sm:$0x7f]
  %v132 = vld [vmem:[%s0 + $0x3c8] sm:$0x7f]
  %v133 = vld [vmem:[%s0 + $0x3d0] sm:$0x7f]
  %v134 = vld [vmem:[%s0 + $0x3d8] sm:$0x7f]
  %v135 = vld [vmem:[%s0 + $0x3e0] sm:$0x7f]
  %v136 = vld [vmem:[%s0 + $0x3e8] sm:$0x7f]
  %v137 = vld [vmem:[%s0 + $0x3f0] sm:$0x7f]
  %v138 = vld [vmem:[%s0 + $0x3f8] sm:$0x7f]
  %v139 = vld [vmem:[%s0 + $0x400] sm:$0x7f]
  %v140 = vld [vmem:[%s0 + $0x408] sm:$0x7f]
  %v141 = vld [vmem:[%s0 + $0x410] sm:$0x7f]
  %v142 = vld [vmem:[%s0 + $0x418] sm:$0x7f]
  %v143 = vld [vmem:[%s0 + $0x420] sm:$0x7f]
  %v144 = vld [vmem:[%s0 + $0x428] sm:$0x7f]
  %v145 = vld [vmem:[%s0 + $0x430] sm:$0x7f]
  %v146 = vld [vmem:[%s0 + $0x438] sm:$0x7f]
  %v147 = vld [vmem:[%s0 + $0x440] sm:$0x7f]
  %v148 = vld [vmem:[%s0 + $0x448] sm:$0x7f]
  %v149 = vld [vmem:[%s0 + $0x450] sm:$0x7f]
  %v150 = vld [vmem:[%s0 + $0x458] sm:$0x7f]
  %v151 = vld [vmem:[%s0 + $0x460] sm:$0x7f]
  %v152 = vld [vmem:[%s0 + $0x468] sm:$0x7f]
  %v153 = vld [vmem:[%s0 + $0x470] sm:$0x7f]
  %v154 = vld [vmem:[%s0 + $0x478] sm:$0x7f]
  %v155 = vld [vmem:[%s0 + $0x480] sm:$0x7f]
  %v156 = vld [vmem:[%s0 + $0x488] sm:$0x7f]
  %v157 = vld [vmem:[%s0 + $0x490] sm:$0x7f]
  %v158 = vld [vmem:[%s0 + $0x498] sm:$0x7f]
  %v159 = vld [vmem:[%s0 + $0x4a0] sm:$0x7f]
  %v160 = vld [vmem:[%s0 + $0x4a8] sm:$0x7f]
  %v161 = vld [vmem:[%s0 + $0x4b0] sm:$0x7f]
  %v162 = vld [vmem:[%s0 + $0x4b8] sm:$0x7f]
  %v163 = vld [vmem:[%s0 + $0x4c0] sm:$0x7f]
  %v164 = vld [vmem:[%s0 + $0x4c8] sm:$0x7f]
  %v165 = vld [vmem:[%s0 + $0x4d0] sm:$0x7f]
  %v166 = vld [vmem:[%s0 + $0x4d8] sm:$0x7f]
  %v167 = vld [vmem:[%s0 + $0x4e0] sm:$0x7f]
  %v168 = vld [vmem:[%s0 + $0x4e8] sm:$0x7f]
  %v169 = vld [vmem:[%s0 + $0x4f0] sm:$0x7f]
  %v170 = vld [vmem:[%s0 + $0x4f8] sm:$0x7f]
  %v171 = vld [vmem:[%s0 + $0x500] sm:$0x7f]
  %v172 = vld [vmem:[%s0 + $0x508] sm:$0x7f]
  %v173 = vld [vmem:[%s0 + $0x510] sm:$0x7f]
  %v174 = vld [vmem:[%s0 + $0x518] sm:$0x7f]
  %v175 = vld [vmem:[%s0 + $0x520] sm:$0x7f]
  %v176 = vld [vmem:[%s0 + $0x528] sm:$0x7f]
  %v177 = vld [vmem:[%s0 + $0x530] sm:$0x7f]
  %v178 = vld [vmem:[%s0 + $0x538] sm:$0x7f]
  %v179 = vld [vmem:[%s0 + $0x540] sm:$0x7f]
  %v180 = vld [vmem:[%s0 + $0x548] sm:$0x7f]
  %v181 = vld [vmem:[%s0 + $0x550] sm:$0x7f]
  %v182 = vld [vmem:[%s0 + $0x558] sm:$0x7f]
  %v183 = vld [vmem:[%s0 + $0x560] sm:$0x7f]
  %v184 = vld [vmem:[%s0 + $0x568] sm:$0x7f]
  %v185 = vld [vmem:[%s0 + $0x570] sm:$0x7f]
  %v186 = vld [vmem:[%s0 + $0x578] sm:$0x7f]
  %v187 = vld [vmem:[%s0 + $0x580] sm:$0x7f]
  %v188 = vld [vmem:[%s0 + $0x588] sm:$0x7f]
  %v189 = vld [vmem:[%s0 + $0x590] sm:$0x7f]
  %v190 = vld [vmem:[%s0 + $0x598] sm:$0x7f]
  %v191 = vld [vmem:[%s0 + $0x5a0] sm:$0x7f]
  %v192 = vld [vmem:[%s0 + $0x5a8] sm:$0x7f]
  %v193 = vld [vmem:[%s0 + $0x5b0] sm:$0x7f]
  %v194 = vld [vmem:[%s0 + $0x5b8] sm:$0x7f]
  %v195 = vld [vmem:[%s0 + $0x5c0] sm:$0x7f]
  %v196 = vld [vmem:[%s0 + $0x5c8] sm:$0x7f]
  %v197 = vld [vmem:[%s0 + $0x5d0] sm:$0x7f]
  %v198 = vld [vmem:[%s0 + $0x5d8] sm:$0x7f]
  %v199 = vld [vmem:[%s0 + $0x5e0] sm:$0x7f]
  %v200 = vld [vmem:[%s0 + $0x5e8] sm:$0x7f]
  %v201 = vld [vmem:[%s0 + $0x5f0] sm:$0x7f]
  %v202 = vld [vmem:[%s0 + $0x5f8] sm:$0x7f]
  %v203 = vld [vmem:[%s1] sm:$0x7f]
  %v204 = vld [vmem:[%s1 + $0x8] sm:$0x7f]
  %v205 = vld [vmem:[%s1 + $0x10] sm:$0x7f]
  %v206 = vld [vmem:[%s1 + $0x18] sm:$0x7f]
  %v207 = vld [vmem:[%s1 + $0x20] sm:$0x7f]
  %v208 = vld [vmem:[%s1 + $0x28] sm:$0x7f]
  %v209 = vld [vmem:[%s1 + $0x30] sm:$0x7f]
  %v210 = vld [vmem:[%s1 + $0x38] sm:$0x7f]
  %v211 = vld [vmem:[%s1 + $0x40] sm:$0x7f]
  %v212 = vld [vmem:[%s1 + $0x48] sm:$0x7f]
  %v213 = vld [vmem:[%s1 + $0x50] sm:$0x7f]
  %v214 = vld [vmem:[%s1 + $0x58] sm:$0x7f]
  %v215 = vld [vmem:[%s1 + $0x60] sm:$0x7f]
  %v216 = vld [vmem:[%s1 + $0x68] sm:$0x7f]
  %v217 = vld [vmem:[%s1 + $0x70] sm:$0x7f]
  %v218 = vld [vmem:[%s1 + $0x78] sm:$0x7f]
  %v219 = vld [vmem:[%s1 + $0x80] sm:$0x7f]
  %v220 = vld [vmem:[%s1 + $0x88] sm:$0x7f]
  %v221 = vld [vmem:[%s1 + $0x90] sm:$0x7f]
  %v222 = vld [vmem:[%s1 + $0x98] sm:$0x7f]
  %v223 = vld [vmem:[%s1 + $0xa0] sm:$0x7f]
  %v224 = vld [vmem:[%s1 + $0xa8] sm:$0x7f]
  %v225 = vld [vmem:[%s1 + $0xb0] sm:$0x7f]
  %v226 = vld [vmem:[%s1 + $0xb8] sm:$0x7f]
  %v227 = vld [vmem:[%s1 + $0xc0] sm:$0x7f]
  %v228 = vld [vmem:[%s1 + $0xc8] sm:$0x7f]
  %v229 = vld [vmem:[%s1 + $0xd0] sm:$0x7f]
  %v230 = vld [vmem:[%s1 + $0xd8] sm:$0x7f]
  %v231 = vld [vmem:[%s1 + $0xe0] sm:$0x7f]
  %v232 = vld [vmem:[%s1 + $0xe8] sm:$0x7f]
  %v233 = vld [vmem:[%s1 + $0xf0] sm:$0x7f]
  %v234 = vld [vmem:[%s1 + $0xf8] sm:$0x7f]
  %v235 = vld [vmem:[%s1 + $0x100] sm:$0x7f]
  %v236 = vld [vmem:[%s1 + $0x108] sm:$0x7f]
  %v237 = vld [vmem:[%s1 + $0x110] sm:$0x7f]
  %v238 = vld [vmem:[%s1 + $0x118] sm:$0x7f]
  %v239 = vld [vmem:[%s1 + $0x120] sm:$0x7f]
  %v240 = vld [vmem:[%s1 + $0x128] sm:$0x7f]
  %v241 = vld [vmem:[%s1 + $0x130] sm:$0x7f]
  %v242 = vld [vmem:[%s1 + $0x138] sm:$0x7f]
  %v243 = vld [vmem:[%s1 + $0x140] sm:$0x7f]
  %v244 = vld [vmem:[%s1 + $0x148] sm:$0x7f]
  %v245 = vld [vmem:[%s1 + $0x150] sm:$0x7f]
  %v246 = vld [vmem:[%s1 + $0x158] sm:$0x7f]
  %v247 = vld [vmem:[%s1 + $0x160] sm:$0x7f]
  %v248 = vld [vmem:[%s1 + $0x168] sm:$0x7f]
  %v249 = vld [vmem:[%s1 + $0x170] sm:$0x7f]
  %v250 = vld [vmem:[%s1 + $0x178] sm:$0x7f]
  %v251 = vld [vmem:[%s1 + $0x180] sm:$0x7f]
  %v252 = vld [vmem:[%s1 + $0x188] sm:$0x7f]
  %v253 = vld [vmem:[%s1 + $0x190] sm:$0x7f]
  %v254 = vld [vmem:[%s1 + $0x198] sm:$0x7f]
  %v255 = vld [vmem:[%s1 + $0x1a0] sm:$0x7f]
  %v256 = vld [vmem:[%s1 + $0x1a8] sm:$0x7f]
  %v257 = vld [vmem:[%s1 + $0x1b0] sm:$0x7f]
  %v258 = vld [vmem:[%s1 + $0x1b8] sm:$0x7f]
  %v259 = vld [vmem:[%s1 + $0x1c0] sm:$0x7f]
  %v260 = vld [vmem:[%s1 + $0x1c8] sm:$0x7f]
  %v261 = vld [vmem:[%s1 + $0x1d0] sm:$0x7f]
  %v262 = vld [vmem:[%s1 + $0x1d8] sm:$0x7f]
  %v263 = vld [vmem:[%s1 + $0x1e0] sm:$0x7f]
  %v264 = vld [vmem:[%s1 + $0x1e8] sm:$0x7f]
  %v265 = vld [vmem:[%s1 + $0x1f0] sm:$0x7f]
  %v266 = vld [vmem:[%s1 + $0x1f8] sm:$0x7f]
  %v267 = vld [vmem:[%s1 + $0x200] sm:$0x7f]
  %v268 = vld [vmem:[%s1 + $0x208] sm:$0x7f]
  %v269 = vld [vmem:[%s1 + $0x210] sm:$0x7f]
  %v270 = vld [vmem:[%s1 + $0x218] sm:$0x7f]
  %v271 = vld [vmem:[%s1 + $0x220] sm:$0x7f]
  %v272 = vld [vmem:[%s1 + $0x228] sm:$0x7f]
  %v273 = vld [vmem:[%s1 + $0x230] sm:$0x7f]
  %v274 = vld [vmem:[%s1 + $0x238] sm:$0x7f]
  %v275 = vld [vmem:[%s1 + $0x240] sm:$0x7f]
  %v276 = vld [vmem:[%s1 + $0x248] sm:$0x7f]
  %v277 = vld [vmem:[%s1 + $0x250] sm:$0x7f]
  %v278 = vld [vmem:[%s1 + $0x258] sm:$0x7f]
  %v279 = vld [vmem:[%s1 + $0x260] sm:$0x7f]
  %v280 = vld [vmem:[%s1 + $0x268] sm:$0x7f]
  %v281 = vld [vmem:[%s1 + $0x270] sm:$0x7f]
  %v282 = vld [vmem:[%s1 + $0x278] sm:$0x7f]
  %v283 = vld [vmem:[%s1 + $0x280] sm:$0x7f]
  %v284 = vld [vmem:[%s1 + $0x288] sm:$0x7f]
  %v285 = vld [vmem:[%s1 + $0x290] sm:$0x7f]
  %v286 = vld [vmem:[%s1 + $0x298] sm:$0x7f]
  %v287 = vld [vmem:[%s1 + $0x2a0] sm:$0x7f]
  %v288 = vld [vmem:[%s1 + $0x2a8] sm:$0x7f]
  %v289 = vld [vmem:[%s1 + $0x2b0] sm:$0x7f]
  %v290 = vld [vmem:[%s1 + $0x2b8] sm:$0x7f]
  %v291 = vld [vmem:[%s1 + $0x2c0] sm:$0x7f]
  %v292 = vld [vmem:[%s1 + $0x2c8] sm:$0x7f]
  %v293 = vld [vmem:[%s1 + $0x2d0] sm:$0x7f]
  %v294 = vld [vmem:[%s1 + $0x2d8] sm:$0x7f]
  %v295 = vld [vmem:[%s1 + $0x2e0] sm:$0x7f]
  %v296 = vld [vmem:[%s1 + $0x2e8] sm:$0x7f]
  %v297 = vld [vmem:[%s1 + $0x2f0] sm:$0x7f]
  %v298 = vld [vmem:[%s1 + $0x2f8] sm:$0x7f]
  %v299 = vld [vmem:[%s1 + $0x300] sm:$0x7f]
  %v300 = vld [vmem:[%s1 + $0x308] sm:$0x7f]
  %v301 = vld [vmem:[%s1 + $0x310] sm:$0x7f]
  %v302 = vld [vmem:[%s1 + $0x318] sm:$0x7f]
  %v303 = vld [vmem:[%s1 + $0x320] sm:$0x7f]
  %v304 = vld [vmem:[%s1 + $0x328] sm:$0x7f]
  %v305 = vld [vmem:[%s1 + $0x330] sm:$0x7f]
  %v306 = vld [vmem:[%s1 + $0x338] sm:$0x7f]
  %v307 = vld [vmem:[%s1 + $0x340] sm:$0x7f]
  %v308 = vld [vmem:[%s1 + $0x348] sm:$0x7f]
  %v309 = vld [vmem:[%s1 + $0x350] sm:$0x7f]
  %v310 = vld [vmem:[%s1 + $0x358] sm:$0x7f]
  %v311 = vld [vmem:[%s1 + $0x360] sm:$0x7f]
  %v312 = vld [vmem:[%s1 + $0x368] sm:$0x7f]
  %v313 = vld [vmem:[%s1 + $0x370] sm:$0x7f]
  %v314 = vld [vmem:[%s1 + $0x378] sm:$0x7f]
  %v315 = vld [vmem:[%s1 + $0x380] sm:$0x7f]
  %v316 = vld [vmem:[%s1 + $0x388] sm:$0x7f]
  %v317 = vld [vmem:[%s1 + $0x390] sm:$0x7f]
  %v318 = vld [vmem:[%s1 + $0x398] sm:$0x7f]
  %v319 = vld [vmem:[%s1 + $0x3a0] sm:$0x7f]
  %v320 = vld [vmem:[%s1 + $0x3a8] sm:$0x7f]
  %v321 = vld [vmem:[%s1 + $0x3b0] sm:$0x7f]
  %v322 = vld [vmem:[%s1 + $0x3b8] sm:$0x7f]
  %v323 = vld [vmem:[%s1 + $0x3c0] sm:$0x7f]
  %v324 = vld [vmem:[%s1 + $0x3c8] sm:$0x7f]
  %v325 = vld [vmem:[%s1 + $0x3d0] sm:$0x7f]
  %v326 = vld [vmem:[%s1 + $0x3d8] sm:$0x7f]
  %v327 = vld [vmem:[%s1 + $0x3e0] sm:$0x7f]
  %v328 = vld [vmem:[%s1 + $0x3e8] sm:$0x7f]
  %v329 = vld [vmem:[%s1 + $0x3f0] sm:$0x7f]
  %v330 = vld [vmem:[%s1 + $0x3f8] sm:$0x7f]
  %v331 = vld [vmem:[%s1 + $0x400] sm:$0x7f]
  %v332 = vld [vmem:[%s1 + $0x408] sm:$0x7f]
  %v333 = vld [vmem:[%s1 + $0x410] sm:$0x7f]
  %v334 = vld [vmem:[%s1 + $0x418] sm:$0x7f]
  %v335 = vld [vmem:[%s1 + $0x420] sm:$0x7f]
  %v336 = vld [vmem:[%s1 + $0x428] sm:$0x7f]
  %v337 = vld [vmem:[%s1 + $0x430] sm:$0x7f]
  %v338 = vld [vmem:[%s1 + $0x438] sm:$0x7f]
  %v339 = vld [vmem:[%s1 + $0x440] sm:$0x7f]
  %v340 = vld [vmem:[%s1 + $0x448] sm:$0x7f]
  %v341 = vld [vmem:[%s1 + $0x450] sm:$0x7f]
  %v342 = vld [vmem:[%s1 + $0x458] sm:$0x7f]
  %v343 = vld [vmem:[%s1 + $0x460] sm:$0x7f]
  %v344 = vld [vmem:[%s1 + $0x468] sm:$0x7f]
  %v345 = vld [vmem:[%s1 + $0x470] sm:$0x7f]
  %v346 = vld [vmem:[%s1 + $0x478] sm:$0x7f]
  %v347 = vld [vmem:[%s1 + $0x480] sm:$0x7f]
  %v348 = vld [vmem:[%s1 + $0x488] sm:$0x7f]
  %v349 = vld [vmem:[%s1 + $0x490] sm:$0x7f]
  %v350 = vld [vmem:[%s1 + $0x498] sm:$0x7f]
  %v351 = vld [vmem:[%s1 + $0x4a0] sm:$0x7f]
  %v352 = vld [vmem:[%s1 + $0x4a8] sm:$0x7f]
  %v353 = vld [vmem:[%s1 + $0x4b0] sm:$0x7f]
  %v354 = vld [vmem:[%s1 + $0x4b8] sm:$0x7f]
  %v355 = vld [vmem:[%s1 + $0x4c0] sm:$0x7f]
  %v356 = vld [vmem:[%s1 + $0x4c8] sm:$0x7f]
  %v357 = vld [vmem:[%s1 + $0x4d0] sm:$0x7f]
  %v358 = vld [vmem:[%s1 + $0x4d8] sm:$0x7f]
  %v359 = vld [vmem:[%s1 + $0x4e0] sm:$0x7f]
  %v360 = vld [vmem:[%s1 + $0x4e8] sm:$0x7f]
  %v361 = vld [vmem:[%s1 + $0x4f0] sm:$0x7f]
  %v362 = vld [vmem:[%s1 + $0x4f8] sm:$0x7f]
  %v363 = vld [vmem:[%s1 + $0x500] sm:$0x7f]
  %v364 = vld [vmem:[%s1 + $0x508] sm:$0x7f]
  %v365 = vld [vmem:[%s1 + $0x510] sm:$0x7f]
  %v366 = vld [vmem:[%s1 + $0x518] sm:$0x7f]
  %v367 = vld [vmem:[%s1 + $0x520] sm:$0x7f]
  %v368 = vld [vmem:[%s1 + $0x528] sm:$0x7f]
  %v369 = vld [vmem:[%s1 + $0x530] sm:$0x7f]
  %v370 = vld [vmem:[%s1 + $0x538] sm:$0x7f]
  %v371 = vld [vmem:[%s1 + $0x540] sm:$0x7f]
  %v372 = vld [vmem:[%s1 + $0x548] sm:$0x7f]
  %v373 = vld [vmem:[%s1 + $0x550] sm:$0x7f]
  %v374 = vld [vmem:[%s1 + $0x558] sm:$0x7f]
  %v375 = vld [vmem:[%s1 + $0x560] sm:$0x7f]
  %v376 = vld [vmem:[%s1 + $0x568] sm:$0x7f]
  %v377 = vld [vmem:[%s1 + $0x570] sm:$0x7f]
  %v378 = vld [vmem:[%s1 + $0x578] sm:$0x7f]
  %v379 = vld [vmem:[%s1 + $0x580] sm:$0x7f]
  %v380 = vld [vmem:[%s1 + $0x588] sm:$0x7f]
  %v381 = vld [vmem:[%s1 + $0x590] sm:$0x7f]
  %v382 = vld [vmem:[%s1 + $0x598] sm:$0x7f]
  %v383 = vld [vmem:[%s1 + $0x5a0] sm:$0x7f]
  %v384 = vld [vmem:[%s1 + $0x5a8] sm:$0x7f]
  %v385 = vld [vmem:[%s1 + $0x5b0] sm:$0x7f]
  %v386 = vld [vmem:[%s1 + $0x5b8] sm:$0x7f]
  %v387 = vld [vmem:[%s1 + $0x5c0] sm:$0x7f]
  %v388 = vld [vmem:[%s1 + $0x5c8] sm:$0x7f]
  %v389 = vld [vmem:[%s1 + $0x5d0] sm:$0x7f]
  %v390 = vld [vmem:[%s1 + $0x5d8] sm:$0x7f]
  %v391 = vld [vmem:[%s1 + $0x5e0] sm:$0x7f]
  %v392 = vld [vmem:[%s1 + $0x5e8] sm:$0x7f]
  %v393 = vld [vmem:[%s1 + $0x5f0] sm:$0x7f]
  %v394 = vld [vmem:[%s1 + $0x5f8] sm:$0x7f]
  %v395 = vadd.f32 %v11, %v203
  %v396 = vadd.f32 %v12, %v204
  %v397 = vadd.f32 %v13, %v205
  %v398 = vadd.f32 %v14, %v206
  %v399 = vadd.f32 %v15, %v207
  %v400 = vadd.f32 %v16, %v208
  %v401 = vadd.f32 %v17, %v209
  %v402 = vadd.f32 %v18, %v210
  %v403 = vadd.f32 %v19, %v211
  %v404 = vadd.f32 %v20, %v212
  %v405 = vadd.f32 %v21, %v213
  %v406 = vadd.f32 %v22, %v214
  %v407 = vadd.f32 %v23, %v215
  %v408 = vadd.f32 %v24, %v216
  %v409 = vadd.f32 %v25, %v217
  %v410 = vadd.f32 %v26, %v218
  %v411 = vadd.f32 %v27, %v219
  %v412 = vadd.f32 %v28, %v220
  %v413 = vadd.f32 %v29, %v221
  %v414 = vadd.f32 %v30, %v222
  %v415 = vadd.f32 %v31, %v223
  %v416 = vadd.f32 %v32, %v224
  %v417 = vadd.f32 %v33, %v225
  %v418 = vadd.f32 %v34, %v226
  %v419 = vadd.f32 %v35, %v227
  %v420 = vadd.f32 %v36, %v228
  %v421 = vadd.f32 %v37, %v229
  %v422 = vadd.f32 %v38, %v230
  %v423 = vadd.f32 %v39, %v231
  %v424 = vadd.f32 %v40, %v232
  %v425 = vadd.f32 %v41, %v233
  %v426 = vadd.f32 %v42, %v234
  %v427 = vadd.f32 %v43, %v235
  %v428 = vadd.f32 %v44, %v236
  %v429 = vadd.f32 %v45, %v237
  %v430 = vadd.f32 %v46, %v238
  %v431 = vadd.f32 %v47, %v239
  %v432 = vadd.f32 %v48, %v240
  %v433 = vadd.f32 %v49, %v241
  %v434 = vadd.f32 %v50, %v242
  %v435 = vadd.f32 %v51, %v243
  %v436 = vadd.f32 %v52, %v244
  %v437 = vadd.f32 %v53, %v245
  %v438 = vadd.f32 %v54, %v246
  %v439 = vadd.f32 %v55, %v247
  %v440 = vadd.f32 %v56, %v248
  %v441 = vadd.f32 %v57, %v249
  %v442 = vadd.f32 %v58, %v250
  %v443 = vadd.f32 %v59, %v251
  %v444 = vadd.f32 %v60, %v252
  %v445 = vadd.f32 %v61, %v253
  %v446 = vadd.f32 %v62, %v254
  %v447 = vadd.f32 %v63, %v255
  %v448 = vadd.f32 %v64, %v256
  %v449 = vadd.f32 %v65, %v257
  %v450 = vadd.f32 %v66, %v258
  %v451 = vadd.f32 %v67, %v259
  %v452 = vadd.f32 %v68, %v260
  %v453 = vadd.f32 %v69, %v261
  %v454 = vadd.f32 %v70, %v262
  %v455 = vadd.f32 %v71, %v263
  %v456 = vadd.f32 %v72, %v264
  %v457 = vadd.f32 %v73, %v265
  %v458 = vadd.f32 %v74, %v266
  %v459 = vadd.f32 %v75, %v267
  %v460 = vadd.f32 %v76, %v268
  %v461 = vadd.f32 %v77, %v269
  %v462 = vadd.f32 %v78, %v270
  %v463 = vadd.f32 %v79, %v271
  %v464 = vadd.f32 %v80, %v272
  %v465 = vadd.f32 %v81, %v273
  %v466 = vadd.f32 %v82, %v274
  %v467 = vadd.f32 %v83, %v275
  %v468 = vadd.f32 %v84, %v276
  %v469 = vadd.f32 %v85, %v277
  %v470 = vadd.f32 %v86, %v278
  %v471 = vadd.f32 %v87, %v279
  %v472 = vadd.f32 %v88, %v280
  %v473 = vadd.f32 %v89, %v281
  %v474 = vadd.f32 %v90, %v282
  %v475 = vadd.f32 %v91, %v283
  %v476 = vadd.f32 %v92, %v284
  %v477 = vadd.f32 %v93, %v285
  %v478 = vadd.f32 %v94, %v286
  %v479 = vadd.f32 %v95, %v287
  %v480 = vadd.f32 %v96, %v288
  %v481 = vadd.f32 %v97, %v289
  %v482 = vadd.f32 %v98, %v290
  %v483 = vadd.f32 %v99, %v291
  %v484 = vadd.f32 %v100, %v292
  %v485 = vadd.f32 %v101, %v293
  %v486 = vadd.f32 %v102, %v294
  %v487 = vadd.f32 %v103, %v295
  %v488 = vadd.f32 %v104, %v296
  %v489 = vadd.f32 %v105, %v297
  %v490 = vadd.f32 %v106, %v298
  %v491 = vadd.f32 %v107, %v299
  %v492 = vadd.f32 %v108, %v300
  %v493 = vadd.f32 %v109, %v301
  %v494 = vadd.f32 %v110, %v302
  %v495 = vadd.f32 %v111, %v303
  %v496 = vadd.f32 %v112, %v304
  %v497 = vadd.f32 %v113, %v305
  %v498 = vadd.f32 %v114, %v306
  %v499 = vadd.f32 %v115, %v307
  %v500 = vadd.f32 %v116, %v308
  %v501 = vadd.f32 %v117, %v309
  %v502 = vadd.f32 %v118, %v310
  %v503 = vadd.f32 %v119, %v311
  %v504 = vadd.f32 %v120, %v312
  %v505 = vadd.f32 %v121, %v313
  %v506 = vadd.f32 %v122, %v314
  %v507 = vadd.f32 %v123, %v315
  %v508 = vadd.f32 %v124, %v316
  %v509 = vadd.f32 %v125, %v317
  %v510 = vadd.f32 %v126, %v318
  %v511 = vadd.f32 %v127, %v319
  %v512 = vadd.f32 %v128, %v320
  %v513 = vadd.f32 %v129, %v321
  %v514 = vadd.f32 %v130, %v322
  %v515 = vadd.f32 %v131, %v323
  %v516 = vadd.f32 %v132, %v324
  %v517 = vadd.f32 %v133, %v325
  %v518 = vadd.f32 %v134, %v326
  %v519 = vadd.f32 %v135, %v327
  %v520 = vadd.f32 %v136, %v328
  %v521 = vadd.f32 %v137, %v329
  %v522 = vadd.f32 %v138, %v330
  %v523 = vadd.f32 %v139, %v331
  %v524 = vadd.f32 %v140, %v332
  %v525 = vadd.f32 %v141, %v333
  %v526 = vadd.f32 %v142, %v334
  %v527 = vadd.f32 %v143, %v335
  %v528 = vadd.f32 %v144, %v336
  %v529 = vadd.f32 %v145, %v337
  %v530 = vadd.f32 %v146, %v338
  %v531 = vadd.f32 %v147, %v339
  %v532 = vadd.f32 %v148, %v340
  %v533 = vadd.f32 %v149, %v341
  %v534 = vadd.f32 %v150, %v342
  %v535 = vadd.f32 %v151, %v343
  %v536 = vadd.f32 %v152, %v344
  %v537 = vadd.f32 %v153, %v345
  %v538 = vadd.f32 %v154, %v346
  %v539 = vadd.f32 %v155, %v347
  %v540 = vadd.f32 %v156, %v348
  %v541 = vadd.f32 %v157, %v349
  %v542 = vadd.f32 %v158, %v350
  %v543 = vadd.f32 %v159, %v351
  %v544 = vadd.f32 %v160, %v352
  %v545 = vadd.f32 %v161, %v353
  %v546 = vadd.f32 %v162, %v354
  %v547 = vadd.f32 %v163, %v355
  %v548 = vadd.f32 %v164, %v356
  %v549 = vadd.f32 %v165, %v357
  %v550 = vadd.f32 %v166, %v358
  %v551 = vadd.f32 %v167, %v359
  %v552 = vadd.f32 %v168, %v360
  %v553 = vadd.f32 %v169, %v361
  %v554 = vadd.f32 %v170, %v362
  %v555 = vadd.f32 %v171, %v363
  %v556 = vadd.f32 %v172, %v364
  %v557 = vadd.f32 %v173, %v365
  %v558 = vadd.f32 %v174, %v366
  %v559 = vadd.f32 %v175, %v367
  %v560 = vadd.f32 %v176, %v368
  %v561 = vadd.f32 %v177, %v369
  %v562 = vadd.f32 %v178, %v370
  %v563 = vadd.f32 %v179, %v371
  %v564 = vadd.f32 %v180, %v372
  %v565 = vadd.f32 %v181, %v373
  %v566 = vadd.f32 %v182, %v374
  %v567 = vadd.f32 %v183, %v375
  %v568 = vadd.f32 %v184, %v376
  %v569 = vadd.f32 %v185, %v377
  %v570 = vadd.f32 %v186, %v378
  %v571 = vadd.f32 %v187, %v379
  %v572 = vadd.f32 %v188, %v380
  %v573 = vadd.f32 %v189, %v381
  %v574 = vadd.f32 %v190, %v382
  %v575 = vadd.f32 %v191, %v383
  %v576 = vadd.f32 %v192, %v384
  %v577 = vadd.f32 %v193, %v385
  %v578 = vadd.f32 %v194, %v386
  %v579 = vadd.f32 %v195, %v387
  %v580 = vadd.f32 %v196, %v388
  %v581 = vadd.f32 %v197, %v389
  %v582 = vadd.f32 %v198, %v390
  %v583 = vadd.f32 %v199, %v391
  %v584 = vadd.f32 %v200, %v392
  %v585 = vadd.f32 %v201, %v393
  %v586 = vadd.f32 %v202, %v394
  %vm587 = vcmask 55296
  %588 = vst.msk [vmem:[%s2] sm:$0x7f] %vm587, %v395
  %589 = vst.msk [vmem:[%s2 + $0x8] sm:$0x7f] %vm587, %v396
  %590 = vst.msk [vmem:[%s2 + $0x10] sm:$0x7f] %vm587, %v397
  %591 = vst.msk [vmem:[%s2 + $0x18] sm:$0x7f] %vm587, %v398
  %592 = vst.msk [vmem:[%s2 + $0x20] sm:$0x7f] %vm587, %v399
  %593 = vst.msk [vmem:[%s2 + $0x28] sm:$0x7f] %vm587, %v400
  %594 = vst.msk [vmem:[%s2 + $0x30] sm:$0x7f] %vm587, %v401
  %595 = vst.msk [vmem:[%s2 + $0x38] sm:$0x7f] %vm587, %v402
  %596 = vst.msk [vmem:[%s2 + $0x40] sm:$0x7f] %vm587, %v403
  %597 = vst.msk [vmem:[%s2 + $0x48] sm:$0x7f] %vm587, %v404
  %598 = vst.msk [vmem:[%s2 + $0x50] sm:$0x7f] %vm587, %v405
  %599 = vst.msk [vmem:[%s2 + $0x58] sm:$0x7f] %vm587, %v406
  %600 = vst.msk [vmem:[%s2 + $0x60] sm:$0x7f] %vm587, %v407
  %601 = vst.msk [vmem:[%s2 + $0x68] sm:$0x7f] %vm587, %v408
  %602 = vst.msk [vmem:[%s2 + $0x70] sm:$0x7f] %vm587, %v409
  %603 = vst.msk [vmem:[%s2 + $0x78] sm:$0x7f] %vm587, %v410
  %604 = vst.msk [vmem:[%s2 + $0x80] sm:$0x7f] %vm587, %v411
  %605 = vst.msk [vmem:[%s2 + $0x88] sm:$0x7f] %vm587, %v412
  %606 = vst.msk [vmem:[%s2 + $0x90] sm:$0x7f] %vm587, %v413
  %607 = vst.msk [vmem:[%s2 + $0x98] sm:$0x7f] %vm587, %v414
  %608 = vst.msk [vmem:[%s2 + $0xa0] sm:$0x7f] %vm587, %v415
  %609 = vst.msk [vmem:[%s2 + $0xa8] sm:$0x7f] %vm587, %v416
  %610 = vst.msk [vmem:[%s2 + $0xb0] sm:$0x7f] %vm587, %v417
  %611 = vst.msk [vmem:[%s2 + $0xb8] sm:$0x7f] %vm587, %v418
  %612 = vst.msk [vmem:[%s2 + $0xc0] sm:$0x7f] %vm587, %v419
  %613 = vst.msk [vmem:[%s2 + $0xc8] sm:$0x7f] %vm587, %v420
  %614 = vst.msk [vmem:[%s2 + $0xd0] sm:$0x7f] %vm587, %v421
  %615 = vst.msk [vmem:[%s2 + $0xd8] sm:$0x7f] %vm587, %v422
  %616 = vst.msk [vmem:[%s2 + $0xe0] sm:$0x7f] %vm587, %v423
  %617 = vst.msk [vmem:[%s2 + $0xe8] sm:$0x7f] %vm587, %v424
  %618 = vst.msk [vmem:[%s2 + $0xf0] sm:$0x7f] %vm587, %v425
  %619 = vst.msk [vmem:[%s2 + $0xf8] sm:$0x7f] %vm587, %v426
  %620 = vst.msk [vmem:[%s2 + $0x100] sm:$0x7f] %vm587, %v427
  %621 = vst.msk [vmem:[%s2 + $0x108] sm:$0x7f] %vm587, %v428
  %622 = vst.msk [vmem:[%s2 + $0x110] sm:$0x7f] %vm587, %v429
  %623 = vst.msk [vmem:[%s2 + $0x118] sm:$0x7f] %vm587, %v430
  %624 = vst.msk [vmem:[%s2 + $0x120] sm:$0x7f] %vm587, %v431
  %625 = vst.msk [vmem:[%s2 + $0x128] sm:$0x7f] %vm587, %v432
  %626 = vst.msk [vmem:[%s2 + $0x130] sm:$0x7f] %vm587, %v433
  %627 = vst.msk [vmem:[%s2 + $0x138] sm:$0x7f] %vm587, %v434
  %628 = vst.msk [vmem:[%s2 + $0x140] sm:$0x7f] %vm587, %v435
  %629 = vst.msk [vmem:[%s2 + $0x148] sm:$0x7f] %vm587, %v436
  %630 = vst.msk [vmem:[%s2 + $0x150] sm:$0x7f] %vm587, %v437
  %631 = vst.msk [vmem:[%s2 + $0x158] sm:$0x7f] %vm587, %v438
  %632 = vst.msk [vmem:[%s2 + $0x160] sm:$0x7f] %vm587, %v439
  %633 = vst.msk [vmem:[%s2 + $0x168] sm:$0x7f] %vm587, %v440
  %634 = vst.msk [vmem:[%s2 + $0x170] sm:$0x7f] %vm587, %v441
  %635 = vst.msk [vmem:[%s2 + $0x178] sm:$0x7f] %vm587, %v442
  %636 = vst.msk [vmem:[%s2 + $0x180] sm:$0x7f] %vm587, %v443
  %637 = vst.msk [vmem:[%s2 + $0x188] sm:$0x7f] %vm587, %v444
  %638 = vst.msk [vmem:[%s2 + $0x190] sm:$0x7f] %vm587, %v445
  %639 = vst.msk [vmem:[%s2 + $0x198] sm:$0x7f] %vm587, %v446
  %640 = vst.msk [vmem:[%s2 + $0x1a0] sm:$0x7f] %vm587, %v447
  %641 = vst.msk [vmem:[%s2 + $0x1a8] sm:$0x7f] %vm587, %v448
  %642 = vst.msk [vmem:[%s2 + $0x1b0] sm:$0x7f] %vm587, %v449
  %643 = vst.msk [vmem:[%s2 + $0x1b8] sm:$0x7f] %vm587, %v450
  %644 = vst.msk [vmem:[%s2 + $0x1c0] sm:$0x7f] %vm587, %v451
  %645 = vst.msk [vmem:[%s2 + $0x1c8] sm:$0x7f] %vm587, %v452
  %646 = vst.msk [vmem:[%s2 + $0x1d0] sm:$0x7f] %vm587, %v453
  %647 = vst.msk [vmem:[%s2 + $0x1d8] sm:$0x7f] %vm587, %v454
  %648 = vst.msk [vmem:[%s2 + $0x1e0] sm:$0x7f] %vm587, %v455
  %649 = vst.msk [vmem:[%s2 + $0x1e8] sm:$0x7f] %vm587, %v456
  %650 = vst.msk [vmem:[%s2 + $0x1f0] sm:$0x7f] %vm587, %v457
  %651 = vst.msk [vmem:[%s2 + $0x1f8] sm:$0x7f] %vm587, %v458
  %652 = vst.msk [vmem:[%s2 + $0x200] sm:$0x7f] %vm587, %v459
  %653 = vst.msk [vmem:[%s2 + $0x208] sm:$0x7f] %vm587, %v460
  %654 = vst.msk [vmem:[%s2 + $0x210] sm:$0x7f] %vm587, %v461
  %655 = vst.msk [vmem:[%s2 + $0x218] sm:$0x7f] %vm587, %v462
  %656 = vst.msk [vmem:[%s2 + $0x220] sm:$0x7f] %vm587, %v463
  %657 = vst.msk [vmem:[%s2 + $0x228] sm:$0x7f] %vm587, %v464
  %658 = vst.msk [vmem:[%s2 + $0x230] sm:$0x7f] %vm587, %v465
  %659 = vst.msk [vmem:[%s2 + $0x238] sm:$0x7f] %vm587, %v466
  %660 = vst.msk [vmem:[%s2 + $0x240] sm:$0x7f] %vm587, %v467
  %661 = vst.msk [vmem:[%s2 + $0x248] sm:$0x7f] %vm587, %v468
  %662 = vst.msk [vmem:[%s2 + $0x250] sm:$0x7f] %vm587, %v469
  %663 = vst.msk [vmem:[%s2 + $0x258] sm:$0x7f] %vm587, %v470
  %664 = vst.msk [vmem:[%s2 + $0x260] sm:$0x7f] %vm587, %v471
  %665 = vst.msk [vmem:[%s2 + $0x268] sm:$0x7f] %vm587, %v472
  %666 = vst.msk [vmem:[%s2 + $0x270] sm:$0x7f] %vm587, %v473
  %667 = vst.msk [vmem:[%s2 + $0x278] sm:$0x7f] %vm587, %v474
  %668 = vst.msk [vmem:[%s2 + $0x280] sm:$0x7f] %vm587, %v475
  %669 = vst.msk [vmem:[%s2 + $0x288] sm:$0x7f] %vm587, %v476
  %670 = vst.msk [vmem:[%s2 + $0x290] sm:$0x7f] %vm587, %v477
  %671 = vst.msk [vmem:[%s2 + $0x298] sm:$0x7f] %vm587, %v478
  %672 = vst.msk [vmem:[%s2 + $0x2a0] sm:$0x7f] %vm587, %v479
  %673 = vst.msk [vmem:[%s2 + $0x2a8] sm:$0x7f] %vm587, %v480
  %674 = vst.msk [vmem:[%s2 + $0x2b0] sm:$0x7f] %vm587, %v481
  %675 = vst.msk [vmem:[%s2 + $0x2b8] sm:$0x7f] %vm587, %v482
  %676 = vst.msk [vmem:[%s2 + $0x2c0] sm:$0x7f] %vm587, %v483
  %677 = vst.msk [vmem:[%s2 + $0x2c8] sm:$0x7f] %vm587, %v484
  %678 = vst.msk [vmem:[%s2 + $0x2d0] sm:$0x7f] %vm587, %v485
  %679 = vst.msk [vmem:[%s2 + $0x2d8] sm:$0x7f] %vm587, %v486
  %680 = vst.msk [vmem:[%s2 + $0x2e0] sm:$0x7f] %vm587, %v487
  %681 = vst.msk [vmem:[%s2 + $0x2e8] sm:$0x7f] %vm587, %v488
  %682 = vst.msk [vmem:[%s2 + $0x2f0] sm:$0x7f] %vm587, %v489
  %683 = vst.msk [vmem:[%s2 + $0x2f8] sm:$0x7f] %vm587, %v490
  %684 = vst.msk [vmem:[%s2 + $0x300] sm:$0x7f] %vm587, %v491
  %685 = vst.msk [vmem:[%s2 + $0x308] sm:$0x7f] %vm587, %v492
  %686 = vst.msk [vmem:[%s2 + $0x310] sm:$0x7f] %vm587, %v493
  %687 = vst.msk [vmem:[%s2 + $0x318] sm:$0x7f] %vm587, %v494
  %688 = vst.msk [vmem:[%s2 + $0x320] sm:$0x7f] %vm587, %v495
  %689 = vst.msk [vmem:[%s2 + $0x328] sm:$0x7f] %vm587, %v496
  %690 = vst.msk [vmem:[%s2 + $0x330] sm:$0x7f] %vm587, %v497
  %691 = vst.msk [vmem:[%s2 + $0x338] sm:$0x7f] %vm587, %v498
  %692 = vst.msk [vmem:[%s2 + $0x340] sm:$0x7f] %vm587, %v499
  %693 = vst.msk [vmem:[%s2 + $0x348] sm:$0x7f] %vm587, %v500
  %694 = vst.msk [vmem:[%s2 + $0x350] sm:$0x7f] %vm587, %v501
  %695 = vst.msk [vmem:[%s2 + $0x358] sm:$0x7f] %vm587, %v502
  %696 = vst.msk [vmem:[%s2 + $0x360] sm:$0x7f] %vm587, %v503
  %697 = vst.msk [vmem:[%s2 + $0x368] sm:$0x7f] %vm587, %v504
  %698 = vst.msk [vmem:[%s2 + $0x370] sm:$0x7f] %vm587, %v505
  %699 = vst.msk [vmem:[%s2 + $0x378] sm:$0x7f] %vm587, %v506
  %700 = vst.msk [vmem:[%s2 + $0x380] sm:$0x7f] %vm587, %v507
  %701 = vst.msk [vmem:[%s2 + $0x388] sm:$0x7f] %vm587, %v508
  %702 = vst.msk [vmem:[%s2 + $0x390] sm:$0x7f] %vm587, %v509
  %703 = vst.msk [vmem:[%s2 + $0x398] sm:$0x7f] %vm587, %v510
  %704 = vst.msk [vmem:[%s2 + $0x3a0] sm:$0x7f] %vm587, %v511
  %705 = vst.msk [vmem:[%s2 + $0x3a8] sm:$0x7f] %vm587, %v512
  %706 = vst.msk [vmem:[%s2 + $0x3b0] sm:$0x7f] %vm587, %v513
  %707 = vst.msk [vmem:[%s2 + $0x3b8] sm:$0x7f] %vm587, %v514
  %708 = vst.msk [vmem:[%s2 + $0x3c0] sm:$0x7f] %vm587, %v515
  %709 = vst.msk [vmem:[%s2 + $0x3c8] sm:$0x7f] %vm587, %v516
  %710 = vst.msk [vmem:[%s2 + $0x3d0] sm:$0x7f] %vm587, %v517
  %711 = vst.msk [vmem:[%s2 + $0x3d8] sm:$0x7f] %vm587, %v518
  %712 = vst.msk [vmem:[%s2 + $0x3e0] sm:$0x7f] %vm587, %v519
  %713 = vst.msk [vmem:[%s2 + $0x3e8] sm:$0x7f] %vm587, %v520
  %714 = vst.msk [vmem:[%s2 + $0x3f0] sm:$0x7f] %vm587, %v521
  %715 = vst.msk [vmem:[%s2 + $0x3f8] sm:$0x7f] %vm587, %v522
  %716 = vst.msk [vmem:[%s2 + $0x400] sm:$0x7f] %vm587, %v523
  %717 = vst.msk [vmem:[%s2 + $0x408] sm:$0x7f] %vm587, %v524
  %718 = vst.msk [vmem:[%s2 + $0x410] sm:$0x7f] %vm587, %v525
  %719 = vst.msk [vmem:[%s2 + $0x418] sm:$0x7f] %vm587, %v526
  %720 = vst.msk [vmem:[%s2 + $0x420] sm:$0x7f] %vm587, %v527
  %721 = vst.msk [vmem:[%s2 + $0x428] sm:$0x7f] %vm587, %v528
  %722 = vst.msk [vmem:[%s2 + $0x430] sm:$0x7f] %vm587, %v529
  %723 = vst.msk [vmem:[%s2 + $0x438] sm:$0x7f] %vm587, %v530
  %724 = vst.msk [vmem:[%s2 + $0x440] sm:$0x7f] %vm587, %v531
  %725 = vst.msk [vmem:[%s2 + $0x448] sm:$0x7f] %vm587, %v532
  %726 = vst.msk [vmem:[%s2 + $0x450] sm:$0x7f] %vm587, %v533
  %727 = vst.msk [vmem:[%s2 + $0x458] sm:$0x7f] %vm587, %v534
  %728 = vst.msk [vmem:[%s2 + $0x460] sm:$0x7f] %vm587, %v535
  %729 = vst.msk [vmem:[%s2 + $0x468] sm:$0x7f] %vm587, %v536
  %730 = vst.msk [vmem:[%s2 + $0x470] sm:$0x7f] %vm587, %v537
  %731 = vst.msk [vmem:[%s2 + $0x478] sm:$0x7f] %vm587, %v538
  %732 = vst.msk [vmem:[%s2 + $0x480] sm:$0x7f] %vm587, %v539
  %733 = vst.msk [vmem:[%s2 + $0x488] sm:$0x7f] %vm587, %v540
  %734 = vst.msk [vmem:[%s2 + $0x490] sm:$0x7f] %vm587, %v541
  %735 = vst.msk [vmem:[%s2 + $0x498] sm:$0x7f] %vm587, %v542
  %736 = vst.msk [vmem:[%s2 + $0x4a0] sm:$0x7f] %vm587, %v543
  %737 = vst.msk [vmem:[%s2 + $0x4a8] sm:$0x7f] %vm587, %v544
  %738 = vst.msk [vmem:[%s2 + $0x4b0] sm:$0x7f] %vm587, %v545
  %739 = vst.msk [vmem:[%s2 + $0x4b8] sm:$0x7f] %vm587, %v546
  %740 = vst.msk [vmem:[%s2 + $0x4c0] sm:$0x7f] %vm587, %v547
  %741 = vst.msk [vmem:[%s2 + $0x4c8] sm:$0x7f] %vm587, %v548
  %742 = vst.msk [vmem:[%s2 + $0x4d0] sm:$0x7f] %vm587, %v549
  %743 = vst.msk [vmem:[%s2 + $0x4d8] sm:$0x7f] %vm587, %v550
  %744 = vst.msk [vmem:[%s2 + $0x4e0] sm:$0x7f] %vm587, %v551
  %745 = vst.msk [vmem:[%s2 + $0x4e8] sm:$0x7f] %vm587, %v552
  %746 = vst.msk [vmem:[%s2 + $0x4f0] sm:$0x7f] %vm587, %v553
  %747 = vst.msk [vmem:[%s2 + $0x4f8] sm:$0x7f] %vm587, %v554
  %748 = vst.msk [vmem:[%s2 + $0x500] sm:$0x7f] %vm587, %v555
  %749 = vst.msk [vmem:[%s2 + $0x508] sm:$0x7f] %vm587, %v556
  %750 = vst.msk [vmem:[%s2 + $0x510] sm:$0x7f] %vm587, %v557
  %751 = vst.msk [vmem:[%s2 + $0x518] sm:$0x7f] %vm587, %v558
  %752 = vst.msk [vmem:[%s2 + $0x520] sm:$0x7f] %vm587, %v559
  %753 = vst.msk [vmem:[%s2 + $0x528] sm:$0x7f] %vm587, %v560
  %754 = vst.msk [vmem:[%s2 + $0x530] sm:$0x7f] %vm587, %v561
  %755 = vst.msk [vmem:[%s2 + $0x538] sm:$0x7f] %vm587, %v562
  %756 = vst.msk [vmem:[%s2 + $0x540] sm:$0x7f] %vm587, %v563
  %757 = vst.msk [vmem:[%s2 + $0x548] sm:$0x7f] %vm587, %v564
  %758 = vst.msk [vmem:[%s2 + $0x550] sm:$0x7f] %vm587, %v565
  %759 = vst.msk [vmem:[%s2 + $0x558] sm:$0x7f] %vm587, %v566
  %760 = vst.msk [vmem:[%s2 + $0x560] sm:$0x7f] %vm587, %v567
  %761 = vst.msk [vmem:[%s2 + $0x568] sm:$0x7f] %vm587, %v568
  %762 = vst.msk [vmem:[%s2 + $0x570] sm:$0x7f] %vm587, %v569
  %763 = vst.msk [vmem:[%s2 + $0x578] sm:$0x7f] %vm587, %v570
  %764 = vst.msk [vmem:[%s2 + $0x580] sm:$0x7f] %vm587, %v571
  %765 = vst.msk [vmem:[%s2 + $0x588] sm:$0x7f] %vm587, %v572
  %766 = vst.msk [vmem:[%s2 + $0x590] sm:$0x7f] %vm587, %v573
  %767 = vst.msk [vmem:[%s2 + $0x598] sm:$0x7f] %vm587, %v574
  %768 = vst.msk [vmem:[%s2 + $0x5a0] sm:$0x7f] %vm587, %v575
  %769 = vst.msk [vmem:[%s2 + $0x5a8] sm:$0x7f] %vm587, %v576
  %770 = vst.msk [vmem:[%s2 + $0x5b0] sm:$0x7f] %vm587, %v577
  %771 = vst.msk [vmem:[%s2 + $0x5b8] sm:$0x7f] %vm587, %v578
  %772 = vst.msk [vmem:[%s2 + $0x5c0] sm:$0x7f] %vm587, %v579
  %773 = vst.msk [vmem:[%s2 + $0x5c8] sm:$0x7f] %vm587, %v580
  %774 = vst.msk [vmem:[%s2 + $0x5d0] sm:$0x7f] %vm587, %v581
  %775 = vst.msk [vmem:[%s2 + $0x5d8] sm:$0x7f] %vm587, %v582
  %776 = vst.msk [vmem:[%s2 + $0x5e0] sm:$0x7f] %vm587, %v583
  %777 = vst.msk [vmem:[%s2 + $0x5e8] sm:$0x7f] %vm587, %v584
  %778 = vst.msk [vmem:[%s2 + $0x5f0] sm:$0x7f] %vm587, %v585
  %779 = vst.msk [vmem:[%s2 + $0x5f8] sm:$0x7f] %vm587, %v586
  // Predicated region
  $region10: #{tpu_custom_call.1} parent=0 // pred_check
    _
  $region11: #{tpu_custom_call.1} parent=0 // pred_check_branch
    %781 = sbr.rel (0) target = $region13
  $region12: #{tpu_custom_call.1} parent=0 // pred_region
    _
  $region13: #{tpu_custom_call.1} parent=0 // pred_fallthru
    _
  // Predicated region
  $region14: #{tpu_custom_call.1} parent=0 // pred_check
    _
  $region15: #{tpu_custom_call.1} parent=0 // pred_check_branch
    %783 = sbr.rel (0) target = $region17
  $region16: #{tpu_custom_call.1} parent=0 // pred_region
    _
  $region17: #{tpu_custom_call.1} parent=0 // pred_fallthru
    _

</llo_original>
